<compile_context>
chip_gen: v5e
topology: v5e:2x2
jax: 0.10.0
libtpu: 0.0.40
codegen_flags: <defaults>
</compile_context>

<pallas_src>
import math

import jax
import jax.numpy as jnp
from jax import lax
from jax.experimental import pallas as pl
from jax.experimental.pallas import tpu as pltpu


# ----------------------------- kernel helpers ------------------------------

def _layer_norm(x, gamma, beta, eps=1e-5):
    # PyTorch nn.LayerNorm: biased variance over the last dim, eps=1e-5.
    mean = jnp.mean(x, axis=-1, keepdims=True)
    var = jnp.mean((x - mean) ** 2, axis=-1, keepdims=True)
    return (x - mean) * lax.rsqrt(var + eps) * gamma + beta


def _gelu(x, approximate=False):
    if approximate:
        # tanh approximation: goes to the EUP (separate VLIW slot).  Slightly
        # different numerics than nn.GELU() default; opt-in only.
        c = math.sqrt(2.0 / math.pi)
        return 0.5 * x * (1.0 + jnp.tanh(c * (x + 0.044715 * x * x * x)))
    # nn.GELU() default = exact (erf-based) GELU.
    return 0.5 * x * (1.0 + lax.erf(x * (1.0 / math.sqrt(2.0))))


def make_adapter_kernel(num_hidden, has_skip_proj, approximate_gelu=False):
    """Kernel body for a fixed number of hidden (Linear+GELU) layers."""

    def kernel(*refs):
        x_ref = refs[0]
        pre_g, pre_b = refs[1], refs[2]
        idx = 3
        hidden = []
        for _ in range(num_hidden):
            hidden.append((refs[idx], refs[idx + 1]))
            idx += 2
        proj_w, proj_b = refs[idx], refs[idx + 1]; idx += 2
        if has_skip_proj:
            skip_w, skip_b = refs[idx], refs[idx + 1]; idx += 2
        post_g, post_b = refs[idx], refs[idx + 1]; idx += 2
        out_ref = refs[idx]

        x = x_ref[...]                                   # (tm, Din) f32
        h = _layer_norm(x, pre_g[...], pre_b[...])       # pre_norm (f32)
        for w_ref, b_ref in hidden:                      # mlp: Linear + GELU
            # bf16 operands, f32 accumulation on the MXU.
            h = jnp.dot(h.astype(jnp.bfloat16), w_ref[...],
                        preferred_element_type=jnp.float32) + b_ref[...]
            h = _gelu(h, approximate_gelu)               # f32 elementwise
            # Dropout(0.1): identity at inference.
        proj = jnp.dot(h.astype(jnp.bfloat16), proj_w[...],
                       preferred_element_type=jnp.float32) + proj_b[...]
        if has_skip_proj:
            skip = jnp.dot(x.astype(jnp.bfloat16), skip_w[...],
                           preferred_element_type=jnp.float32) + skip_b[...]
        else:
            skip = x                                     # nn.Identity (Din == Dout)
        out_ref[...] = _layer_norm(proj + skip, post_g[...], post_b[...])  # post_norm

    return kernel


# ------------------------------ host wrapper -------------------------------

def _round_up(x, m):
    return ((x + m - 1) // m) * m


def _choose_tm(n_rows):
    # Big row tiles amortize per-grid-step overhead and fill the MXU M dim
    # (>=128, multiples of 128/256 preferred on v6e/v7x); keep >=2 grid steps
    # when there are enough rows so v7x can shard across its 2 TensorCores.
    if n_rows >= 1024:
        return 512
    if n_rows >= 256:
        return max(128, _round_up((n_rows + 1) // 2, 128))
    return _round_up(max(n_rows, 8), 8)


def adapter_forward(x, params, *, tm=None, approximate_gelu=False):
    """x: (B, S, Din) float32.  Returns (B, S, Dout) float32."""
    B, S, Din = x.shape
    N = B * S
    Dout = params["post_gamma"].shape[-1]
    num_hidden = len(params["hidden"])
    has_skip_proj = params["skip"] is not None

    if tm is None:
        tm = _choose_tm(N)
    Np = _round_up(N, tm)

    x2 = x.reshape(N, Din).astype(jnp.float32)
    if Np != N:
        x2 = jnp.pad(x2, ((0, Np - N), (0, 0)))  # zero rows; sliced off below

    bf16 = jnp.bfloat16
    # Weights in bf16 (halves weight DMA, doubles MXU throughput); biases and
    # LN params stay f32 for the elementwise path.
    flat = [x2, params["pre_gamma"], params["pre_beta"]]
    for (w, b) in params["hidden"]:
        flat += [w.astype(bf16), b]
    flat += [params["proj_w"].astype(bf16), params["proj_b"]]
    if has_skip_proj:
        sw, sb = params["skip"]
        flat += [sw.astype(bf16), sb]
    flat += [params["post_gamma"], params["post_beta"]]

    in_specs = [pl.BlockSpec((tm, Din), lambda i: (i, 0))]
    # Small, grid-invariant parameters: full block, constant index_map (Pallas
    # does not re-fetch blocks whose index does not change across the grid).
    for p in flat[1:]:
        in_specs.append(pl.BlockSpec(p.shape, lambda i: (0, 0)))

    # Advisory cost estimate so XLA schedules/overlaps the call sensibly.
    dims = [Din] + [w.shape[1] for (w, _) in params["hidden"]]
    macs = sum(a * b for a, b in zip(dims[:-1], dims[1:])) + dims[-1] * Dout
    if has_skip_proj:
        macs += Din * Dout
    gelu_units = sum(dims[1:])
    param_bytes = sum(int(p.size) * p.dtype.itemsize for p in flat[1:])
    cost = pl.CostEstimate(
        flops=2 * Np * macs,
        transcendentals=Np * gelu_units,
        bytes_accessed=Np * (Din + Dout) * 4 + param_bytes,
    )

    out = pl.pallas_call(
        make_adapter_kernel(num_hidden, has_skip_proj, approximate_gelu),
        out_shape=jax.ShapeDtypeStruct((Np, Dout), jnp.float32),
        grid=(Np // tm,),
        in_specs=in_specs,
        out_specs=pl.BlockSpec((tm, Dout), lambda i: (i, 0)),
        compiler_params=pltpu.CompilerParams(
            dimension_semantics=("parallel",)),
        cost_estimate=cost,
    )(*flat)

    if Np != N:
        out = out[:N]
    return out.reshape(B, S, Dout)


# --------------------------- deterministic params --------------------------

def init_params(key, input_dim, output_dim, hidden_dims):
    def linear(key, d_in, d_out):
        kw, kb = jax.random.split(key)
        lim = 1.0 / math.sqrt(d_in)
        w = jax.random.uniform(kw, (d_in, d_out), jnp.float32, -lim, lim)
        b = jax.random.uniform(kb, (1, d_out), jnp.float32, -lim, lim)
        return w, b

    keys = jax.random.split(key, len(hidden_dims) + 2)
    hidden = []
    d = input_dim
    for i, h in enumerate(hidden_dims):
        hidden.append(linear(keys[i], d, h))
        d = h
    proj_w, proj_b = linear(keys[-2], d, output_dim)
    # PyTorch: nn.Linear skip only when input_dim != output_dim, else Identity.
    skip = linear(keys[-1], input_dim, output_dim) if input_dim != output_dim else None
    return dict(
        pre_gamma=jnp.ones((1, input_dim), jnp.float32),
        pre_beta=jnp.zeros((1, input_dim), jnp.float32),
        hidden=hidden,
        proj_w=proj_w, proj_b=proj_b,
        skip=skip,
        post_gamma=jnp.ones((1, output_dim), jnp.float32),
        post_beta=jnp.zeros((1, output_dim), jnp.float32),
    )


# -------------------------------- reference --------------------------------

def adapter_ref(x, params):
    B, S, Din = x.shape
    x2 = x.reshape(B * S, Din)
    h = _layer_norm(x2, params["pre_gamma"], params["pre_beta"])
    for w, b in params["hidden"]:
        h = _gelu(h @ w + b)
    proj = h @ params["proj_w"] + params["proj_b"]
    if params["skip"] is not None:
        sw, sb = params["skip"]
        skip = x2 @ sw + sb
    else:
        skip = x2
    out = _layer_norm(proj + skip, params["post_gamma"], params["post_beta"])
    return out.reshape(B, S, -1)


# ----------------------------------- main -----------------------------------

if __name__ == "__main__":
    key = jax.random.PRNGKey(0)
    k1, k2, k3, k4 = jax.random.split(key, 4)

    # Case 1: input_dim != output_dim (learned Linear skip projection).
    B, S, input_dim, output_dim = 2, 8, 32, 16
    hidden_dims = [64, 32]
    x1 = jax.random.normal(k1, (B, S, input_dim), jnp.float32)
    p1 = init_params(k2, input_dim, output_dim, hidden_dims)
    o1 = jax.block_until_ready(adapter_forward(x1, p1))
    r1 = adapter_ref(x1, p1)
    assert o1.shape == (B, S, output_dim)
    # Tolerance reflects bf16 MXU operands (f32 accumulation) vs. f32 reference.
    assert jnp.allclose(o1, r1, rtol=5e-2, atol=5e-2), "mismatch vs reference (skip-proj)"

    # Case 2: input_dim == output_dim (nn.Identity skip; no eye matmul in-kernel).
    x2 = jax.random.normal(k3, (B, S, 32), jnp.float32)
    p2 = init_params(k4, 32, 32, [64])
    o2 = jax.block_until_ready(adapter_forward(x2, p2))
    r2 = adapter_ref(x2, p2)
    assert o2.shape == (B, S, 32)
    assert jnp.allclose(o2, r2, rtol=5e-2, atol=5e-2), "mismatch vs reference (identity skip)"

    print("KERNEL_OK")
</pallas_src>

<mosaic_0001>
module attributes {stable_mosaic.version = 11 : i64} {
  func.func @kernel(%arg0: i32, %arg1: memref<16x32xf32, #tpu.memory_space<vmem>>, %arg2: memref<1x32xf32, #tpu.memory_space<vmem>>, %arg3: memref<1x32xf32, #tpu.memory_space<vmem>>, %arg4: memref<32x64xbf16, #tpu.memory_space<vmem>>, %arg5: memref<1x64xf32, #tpu.memory_space<vmem>>, %arg6: memref<64x32xbf16, #tpu.memory_space<vmem>>, %arg7: memref<1x32xf32, #tpu.memory_space<vmem>>, %arg8: memref<32x16xbf16, #tpu.memory_space<vmem>>, %arg9: memref<1x16xf32, #tpu.memory_space<vmem>>, %arg10: memref<32x16xbf16, #tpu.memory_space<vmem>>, %arg11: memref<1x16xf32, #tpu.memory_space<vmem>>, %arg12: memref<1x16xf32, #tpu.memory_space<vmem>>, %arg13: memref<1x16xf32, #tpu.memory_space<vmem>>, %arg14: memref<16x16xf32, #tpu.memory_space<vmem>>) attributes {dimension_semantics = [#tpu.dimension_semantics<parallel>], iteration_bounds = array<i64: 1>, scalar_prefetch = 0 : i64, scratch_operands = 0 : i64, tpu.core_type = #tpu.core_type<tc>, window_params = [{transform_indices = @transform_0, window_bounds = array<i64: 16, 32>}, {pipeline_mode = #tpu.pipeline_mode<synchronous>, transform_indices = @transform_1, window_bounds = array<i64: 1, 32>}, {pipeline_mode = #tpu.pipeline_mode<synchronous>, transform_indices = @transform_2, window_bounds = array<i64: 1, 32>}, {pipeline_mode = #tpu.pipeline_mode<synchronous>, transform_indices = @transform_3, window_bounds = array<i64: 32, 64>}, {pipeline_mode = #tpu.pipeline_mode<synchronous>, transform_indices = @transform_4, window_bounds = array<i64: 1, 64>}, {pipeline_mode = #tpu.pipeline_mode<synchronous>, transform_indices = @transform_5, window_bounds = array<i64: 64, 32>}, {pipeline_mode = #tpu.pipeline_mode<synchronous>, transform_indices = @transform_6, window_bounds = array<i64: 1, 32>}, {pipeline_mode = #tpu.pipeline_mode<synchronous>, transform_indices = @transform_7, window_bounds = array<i64: 32, 16>}, {pipeline_mode = #tpu.pipeline_mode<synchronous>, transform_indices = @transform_8, window_bounds = array<i64: 1, 16>}, {pipeline_mode = #tpu.pipeline_mode<synchronous>, transform_indices = @transform_9, window_bounds = array<i64: 32, 16>}, {pipeline_mode = #tpu.pipeline_mode<synchronous>, transform_indices = @transform_10, window_bounds = array<i64: 1, 16>}, {pipeline_mode = #tpu.pipeline_mode<synchronous>, transform_indices = @transform_11, window_bounds = array<i64: 1, 16>}, {pipeline_mode = #tpu.pipeline_mode<synchronous>, transform_indices = @transform_12, window_bounds = array<i64: 1, 16>}, {transform_indices = @transform_13, window_bounds = array<i64: 16, 16>}]} {
    %c0 = arith.constant 0 : index
    %c0_0 = arith.constant 0 : index
    %0 = vector.load %arg1[%c0, %c0_0] : memref<16x32xf32, #tpu.memory_space<vmem>>, vector<16x32xf32>
    %c0_1 = arith.constant 0 : index
    %c0_2 = arith.constant 0 : index
    %1 = vector.load %arg2[%c0_1, %c0_2] : memref<1x32xf32, #tpu.memory_space<vmem>>, vector<1x32xf32>
    %c0_3 = arith.constant 0 : index
    %c0_4 = arith.constant 0 : index
    %2 = vector.load %arg3[%c0_3, %c0_4] : memref<1x32xf32, #tpu.memory_space<vmem>>, vector<1x32xf32>
    %cst = arith.constant dense<0.000000e+00> : vector<16xf32>
    %3 = vector.multi_reduction <add>, %0, %cst [1] : vector<16x32xf32> to vector<16xf32>
    %4 = vector.shape_cast %3 : vector<16xf32> to vector<16x1xf32>
    %cst_5 = arith.constant 3.200000e+01 : f32
    %5 = vector.broadcast %cst_5 : f32 to vector<16x1xf32>
    %6 = arith.divf %4, %5 : vector<16x1xf32>
    %7 = vector.broadcast %6 : vector<16x1xf32> to vector<16x32xf32>
    %8 = arith.subf %0, %7 : vector<16x32xf32>
    %9 = arith.mulf %8, %8 : vector<16x32xf32>
    %cst_6 = arith.constant dense<0.000000e+00> : vector<16xf32>
    %10 = vector.multi_reduction <add>, %9, %cst_6 [1] : vector<16x32xf32> to vector<16xf32>
    %11 = vector.shape_cast %10 : vector<16xf32> to vector<16x1xf32>
    %cst_7 = arith.constant 3.200000e+01 : f32
    %12 = vector.broadcast %cst_7 : f32 to vector<16x1xf32>
    %13 = arith.divf %11, %12 : vector<16x1xf32>
    %14 = vector.broadcast %6 : vector<16x1xf32> to vector<16x32xf32>
    %15 = arith.subf %0, %14 : vector<16x32xf32>
    %cst_8 = arith.constant 9.99999974E-6 : f32
    %16 = vector.broadcast %cst_8 : f32 to vector<16x1xf32>
    %17 = arith.addf %13, %16 : vector<16x1xf32>
    %18 = math.rsqrt %17 : vector<16x1xf32>
    %19 = vector.broadcast %18 : vector<16x1xf32> to vector<16x32xf32>
    %20 = arith.mulf %15, %19 : vector<16x32xf32>
    %21 = vector.broadcast %1 : vector<1x32xf32> to vector<16x32xf32>
    %22 = arith.mulf %20, %21 : vector<16x32xf32>
    %23 = vector.broadcast %2 : vector<1x32xf32> to vector<16x32xf32>
    %24 = arith.addf %22, %23 : vector<16x32xf32>
    %25 = arith.truncf %24 : vector<16x32xf32> to vector<16x32xbf16>
    %c0_9 = arith.constant 0 : index
    %c0_10 = arith.constant 0 : index
    %26 = vector.load %arg4[%c0_9, %c0_10] : memref<32x64xbf16, #tpu.memory_space<vmem>>, vector<32x64xbf16>
    %cst_11 = arith.constant dense<0.000000e+00> : vector<16x64xf32>
    %27 = tpu.matmul %25, %26, %cst_11 {dimension_numbers = #tpu.dot_dimension_numbers<[1], [0], [0], [1], [0, 0, 1, 1], [], []>} : vector<16x32xbf16>, vector<32x64xbf16>, vector<16x64xf32> -> vector<16x64xf32>
    %c0_12 = arith.constant 0 : index
    %c0_13 = arith.constant 0 : index
    %28 = vector.load %arg5[%c0_12, %c0_13] : memref<1x64xf32, #tpu.memory_space<vmem>>, vector<1x64xf32>
    %29 = vector.broadcast %28 : vector<1x64xf32> to vector<16x64xf32>
    %30 = arith.addf %27, %29 : vector<16x64xf32>
    %cst_14 = arith.constant 5.000000e-01 : f32
    %31 = vector.broadcast %cst_14 : f32 to vector<16x64xf32>
    %32 = arith.mulf %31, %30 : vector<16x64xf32>
    %cst_15 = arith.constant 0.707106769 : f32
    %33 = vector.broadcast %cst_15 : f32 to vector<16x64xf32>
    %34 = arith.mulf %30, %33 : vector<16x64xf32>
    %35 = math.erf %34 : vector<16x64xf32>
    %cst_16 = arith.constant 1.000000e+00 : f32
    %36 = vector.broadcast %cst_16 : f32 to vector<16x64xf32>
    %37 = arith.addf %36, %35 : vector<16x64xf32>
    %38 = arith.mulf %32, %37 : vector<16x64xf32>
    %39 = arith.truncf %38 : vector<16x64xf32> to vector<16x64xbf16>
    %c0_17 = arith.constant 0 : index
    %c0_18 = arith.constant 0 : index
    %40 = vector.load %arg6[%c0_17, %c0_18] : memref<64x32xbf16, #tpu.memory_space<vmem>>, vector<64x32xbf16>
    %cst_19 = arith.constant dense<0.000000e+00> : vector<16x32xf32>
    %41 = tpu.matmul %39, %40, %cst_19 {dimension_numbers = #tpu.dot_dimension_numbers<[1], [0], [0], [1], [0, 0, 1, 1], [], []>} : vector<16x64xbf16>, vector<64x32xbf16>, vector<16x32xf32> -> vector<16x32xf32>
    %c0_20 = arith.constant 0 : index
    %c0_21 = arith.constant 0 : index
    %42 = vector.load %arg7[%c0_20, %c0_21] : memref<1x32xf32, #tpu.memory_space<vmem>>, vector<1x32xf32>
    %43 = vector.broadcast %42 : vector<1x32xf32> to vector<16x32xf32>
    %44 = arith.addf %41, %43 : vector<16x32xf32>
    %cst_22 = arith.constant 5.000000e-01 : f32
    %45 = vector.broadcast %cst_22 : f32 to vector<16x32xf32>
    %46 = arith.mulf %45, %44 : vector<16x32xf32>
    %cst_23 = arith.constant 0.707106769 : f32
    %47 = vector.broadcast %cst_23 : f32 to vector<16x32xf32>
    %48 = arith.mulf %44, %47 : vector<16x32xf32>
    %49 = math.erf %48 : vector<16x32xf32>
    %cst_24 = arith.constant 1.000000e+00 : f32
    %50 = vector.broadcast %cst_24 : f32 to vector<16x32xf32>
    %51 = arith.addf %50, %49 : vector<16x32xf32>
    %52 = arith.mulf %46, %51 : vector<16x32xf32>
    %53 = arith.truncf %52 : vector<16x32xf32> to vector<16x32xbf16>
    %c0_25 = arith.constant 0 : index
    %c0_26 = arith.constant 0 : index
    %54 = vector.load %arg8[%c0_25, %c0_26] : memref<32x16xbf16, #tpu.memory_space<vmem>>, vector<32x16xbf16>
    %cst_27 = arith.constant dense<0.000000e+00> : vector<16x16xf32>
    %55 = tpu.matmul %53, %54, %cst_27 {dimension_numbers = #tpu.dot_dimension_numbers<[1], [0], [0], [1], [0, 0, 1, 1], [], []>} : vector<16x32xbf16>, vector<32x16xbf16>, vector<16x16xf32> -> vector<16x16xf32>
    %c0_28 = arith.constant 0 : index
    %c0_29 = arith.constant 0 : index
    %56 = vector.load %arg9[%c0_28, %c0_29] : memref<1x16xf32, #tpu.memory_space<vmem>>, vector<1x16xf32>
    %57 = vector.broadcast %56 : vector<1x16xf32> to vector<16x16xf32>
    %58 = arith.addf %55, %57 : vector<16x16xf32>
    %59 = arith.truncf %0 : vector<16x32xf32> to vector<16x32xbf16>
    %c0_30 = arith.constant 0 : index
    %c0_31 = arith.constant 0 : index
    %60 = vector.load %arg10[%c0_30, %c0_31] : memref<32x16xbf16, #tpu.memory_space<vmem>>, vector<32x16xbf16>
    %cst_32 = arith.constant dense<0.000000e+00> : vector<16x16xf32>
    %61 = tpu.matmul %59, %60, %cst_32 {dimension_numbers = #tpu.dot_dimension_numbers<[1], [0], [0], [1], [0, 0, 1, 1], [], []>} : vector<16x32xbf16>, vector<32x16xbf16>, vector<16x16xf32> -> vector<16x16xf32>
    %c0_33 = arith.constant 0 : index
    %c0_34 = arith.constant 0 : index
    %62 = vector.load %arg11[%c0_33, %c0_34] : memref<1x16xf32, #tpu.memory_space<vmem>>, vector<1x16xf32>
    %63 = vector.broadcast %62 : vector<1x16xf32> to vector<16x16xf32>
    %64 = arith.addf %61, %63 : vector<16x16xf32>
    %65 = arith.addf %58, %64 : vector<16x16xf32>
    %c0_35 = arith.constant 0 : index
    %c0_36 = arith.constant 0 : index
    %66 = vector.load %arg12[%c0_35, %c0_36] : memref<1x16xf32, #tpu.memory_space<vmem>>, vector<1x16xf32>
    %c0_37 = arith.constant 0 : index
    %c0_38 = arith.constant 0 : index
    %67 = vector.load %arg13[%c0_37, %c0_38] : memref<1x16xf32, #tpu.memory_space<vmem>>, vector<1x16xf32>
    %cst_39 = arith.constant dense<0.000000e+00> : vector<16xf32>
    %68 = vector.multi_reduction <add>, %65, %cst_39 [1] : vector<16x16xf32> to vector<16xf32>
    %69 = vector.shape_cast %68 : vector<16xf32> to vector<16x1xf32>
    %cst_40 = arith.constant 1.600000e+01 : f32
    %70 = vector.broadcast %cst_40 : f32 to vector<16x1xf32>
    %71 = arith.divf %69, %70 : vector<16x1xf32>
    %72 = vector.broadcast %71 : vector<16x1xf32> to vector<16x16xf32>
    %73 = arith.subf %65, %72 : vector<16x16xf32>
    %74 = arith.mulf %73, %73 : vector<16x16xf32>
    %cst_41 = arith.constant dense<0.000000e+00> : vector<16xf32>
    %75 = vector.multi_reduction <add>, %74, %cst_41 [1] : vector<16x16xf32> to vector<16xf32>
    %76 = vector.shape_cast %75 : vector<16xf32> to vector<16x1xf32>
    %cst_42 = arith.constant 1.600000e+01 : f32
    %77 = vector.broadcast %cst_42 : f32 to vector<16x1xf32>
    %78 = arith.divf %76, %77 : vector<16x1xf32>
    %79 = vector.broadcast %71 : vector<16x1xf32> to vector<16x16xf32>
    %80 = arith.subf %65, %79 : vector<16x16xf32>
    %cst_43 = arith.constant 9.99999974E-6 : f32
    %81 = vector.broadcast %cst_43 : f32 to vector<16x1xf32>
    %82 = arith.addf %78, %81 : vector<16x1xf32>
    %83 = math.rsqrt %82 : vector<16x1xf32>
    %84 = vector.broadcast %83 : vector<16x1xf32> to vector<16x16xf32>
    %85 = arith.mulf %80, %84 : vector<16x16xf32>
    %86 = vector.broadcast %66 : vector<1x16xf32> to vector<16x16xf32>
    %87 = arith.mulf %85, %86 : vector<16x16xf32>
    %88 = vector.broadcast %67 : vector<1x16xf32> to vector<16x16xf32>
    %89 = arith.addf %87, %88 : vector<16x16xf32>
    %c0_44 = arith.constant 0 : index
    %c0_45 = arith.constant 0 : index
    %90 = vector.load %arg14[%c0_44, %c0_45] : memref<16x16xf32, #tpu.memory_space<vmem>>, vector<16x16xf32>
    tpu.vector_store %arg14[%c0_44, %c0_45], %89 {strides = array<i32>} : memref<16x16xf32, #tpu.memory_space<vmem>>, vector<16x16xf32>,
    return
  }
  func.func @transform_0(%arg0: i32) -> (i32, i32) {
    %c0_i32 = arith.constant 0 : i32
    %c0_i32_0 = arith.constant 0 : i32
    return %arg0, %c0_i32 : i32, i32
  }
  func.func @transform_1(%arg0: i32) -> (i32, i32) {
    %c0_i32 = arith.constant 0 : i32
    %c0_i32_0 = arith.constant 0 : i32
    %c0_i32_1 = arith.constant 0 : i32
    return %c0_i32, %c0_i32_0 : i32, i32
  }
  func.func @transform_2(%arg0: i32) -> (i32, i32) {
    %c0_i32 = arith.constant 0 : i32
    %c0_i32_0 = arith.constant 0 : i32
    %c0_i32_1 = arith.constant 0 : i32
    return %c0_i32, %c0_i32_0 : i32, i32
  }
  func.func @transform_3(%arg0: i32) -> (i32, i32) {
    %c0_i32 = arith.constant 0 : i32
    %c0_i32_0 = arith.constant 0 : i32
    %c0_i32_1 = arith.constant 0 : i32
    return %c0_i32, %c0_i32_0 : i32, i32
  }
  func.func @transform_4(%arg0: i32) -> (i32, i32) {
    %c0_i32 = arith.constant 0 : i32
    %c0_i32_0 = arith.constant 0 : i32
    %c0_i32_1 = arith.constant 0 : i32
    return %c0_i32, %c0_i32_0 : i32, i32
  }
  func.func @transform_5(%arg0: i32) -> (i32, i32) {
    %c0_i32 = arith.constant 0 : i32
    %c0_i32_0 = arith.constant 0 : i32
    %c0_i32_1 = arith.constant 0 : i32
    return %c0_i32, %c0_i32_0 : i32, i32
  }
  func.func @transform_6(%arg0: i32) -> (i32, i32) {
    %c0_i32 = arith.constant 0 : i32
    %c0_i32_0 = arith.constant 0 : i32
    %c0_i32_1 = arith.constant 0 : i32
    return %c0_i32, %c0_i32_0 : i32, i32
  }
  func.func @transform_7(%arg0: i32) -> (i32, i32) {
    %c0_i32 = arith.constant 0 : i32
    %c0_i32_0 = arith.constant 0 : i32
    %c0_i32_1 = arith.constant 0 : i32
    return %c0_i32, %c0_i32_0 : i32, i32
  }
  func.func @transform_8(%arg0: i32) -> (i32, i32) {
    %c0_i32 = arith.constant 0 : i32
    %c0_i32_0 = arith.constant 0 : i32
    %c0_i32_1 = arith.constant 0 : i32
    return %c0_i32, %c0_i32_0 : i32, i32
  }
  func.func @transform_9(%arg0: i32) -> (i32, i32) {
    %c0_i32 = arith.constant 0 : i32
    %c0_i32_0 = arith.constant 0 : i32
    %c0_i32_1 = arith.constant 0 : i32
    return %c0_i32, %c0_i32_0 : i32, i32
  }
  func.func @transform_10(%arg0: i32) -> (i32, i32) {
    %c0_i32 = arith.constant 0 : i32
    %c0_i32_0 = arith.constant 0 : i32
    %c0_i32_1 = arith.constant 0 : i32
    return %c0_i32, %c0_i32_0 : i32, i32
  }
  func.func @transform_11(%arg0: i32) -> (i32, i32) {
    %c0_i32 = arith.constant 0 : i32
    %c0_i32_0 = arith.constant 0 : i32
    %c0_i32_1 = arith.constant 0 : i32
    return %c0_i32, %c0_i32_0 : i32, i32
  }
  func.func @transform_12(%arg0: i32) -> (i32, i32) {
    %c0_i32 = arith.constant 0 : i32
    %c0_i32_0 = arith.constant 0 : i32
    %c0_i32_1 = arith.constant 0 : i32
    return %c0_i32, %c0_i32_0 : i32, i32
  }
  func.func @transform_13(%arg0: i32) -> (i32, i32) {
    %c0_i32 = arith.constant 0 : i32
    %c0_i32_0 = arith.constant 0 : i32
    return %arg0, %c0_i32 : i32, i32
  }
}

</mosaic_0001>

<llo_original>
// kernel: tpu_custom_call.1
$region0: #{tpu_custom_call.1}
  #allocation0 [shape = 'u32[]', space=smem, size = 0x4, offset = 0x4, fixed_abs, tag = 'smem constant byte address 0x4 - core index']
  #allocation1 [shape = 'u32[72,128]{1,0:T(1,128)}', space=vmem, size = 0x9000, scoped, tag = 'internal scratch']
  %s0 = inlined_call_operand.vmem [shape: f32[16,32], index: 0, kind: input, shape index: {}]
  %s1 = inlined_call_operand.vmem [shape: f32[1,32], index: 1, kind: input, shape index: {}]
  %s2 = inlined_call_operand.vmem [shape: f32[1,32], index: 2, kind: input, shape index: {}]
  %s3 = inlined_call_operand.vmem [shape: bf16[32,64], index: 3, kind: input, shape index: {}]
  %s4 = inlined_call_operand.vmem [shape: f32[1,64], index: 4, kind: input, shape index: {}]
  %s5 = inlined_call_operand.vmem [shape: bf16[64,32], index: 5, kind: input, shape index: {}]
  %s6 = inlined_call_operand.vmem [shape: f32[1,32], index: 6, kind: input, shape index: {}]
  %s7 = inlined_call_operand.vmem [shape: bf16[32,16], index: 7, kind: input, shape index: {}]
  %s8 = inlined_call_operand.vmem [shape: f32[1,16], index: 8, kind: input, shape index: {}]
  %s9 = inlined_call_operand.vmem [shape: bf16[32,16], index: 9, kind: input, shape index: {}]
  %s10 = inlined_call_operand.vmem [shape: f32[1,16], index: 10, kind: input, shape index: {}]
  %s11 = inlined_call_operand.vmem [shape: f32[1,16], index: 11, kind: input, shape index: {}]
  %s12 = inlined_call_operand.vmem [shape: f32[1,16], index: 12, kind: input, shape index: {}]
  %s13 = inlined_call_operand.hbm [shape: f32[16,16], index: 13, kind: output, shape index: {}]
  %s14 = sld [smem:[#allocation0]]
  $region62: #{tpu_custom_call.1} parent=0
    _
  %s16 = ssub.s32 1, %s14
  %s17 = scalar_select 0, %s16, %s14
  $region1: #{tpu_custom_call.1} parent=0
    #allocation2 [shape = 'u8[8192]{0}', space=vmem, size = 0x2000, scoped, tag = 'output window, operand 0, single buffered']
    #allocation3 [shape = 's32[1]{0}', space=sflag, size = 0x4, scoped, tag = 'scoped memory for tpu_custom_call.1']
    %18 = vsyncpa [#allocation3], 0
    // Predicated region
    $region2: #{tpu_custom_call.1} parent=1 // pred_check
      _
    $region3: #{tpu_custom_call.1} parent=1 // pred_check_branch
      %20 = sbr.rel (0) target = $region5
    $region4: #{tpu_custom_call.1} parent=1 // pred_region
      _
    $region5: #{tpu_custom_call.1} parent=1 // pred_fallthru
      _
    // Predicated region
    $region6: #{tpu_custom_call.1} parent=1 // pred_check
      _
    $region7: #{tpu_custom_call.1} parent=1 // pred_check_branch
      %22 = sbr.rel (0) target = $region9
    $region8: #{tpu_custom_call.1} parent=1 // pred_region
      _
    $region9: #{tpu_custom_call.1} parent=1 // pred_fallthru
      _
    // Predicated region
    $region10: #{tpu_custom_call.1} parent=1 // pred_check
      _
    $region11: #{tpu_custom_call.1} parent=1 // pred_check_branch
      %24 = sbr.rel (0) target = $region13
    $region12: #{tpu_custom_call.1} parent=1 // pred_region
      _
    $region13: #{tpu_custom_call.1} parent=1 // pred_fallthru
      _
    // Predicated region
    $region14: #{tpu_custom_call.1} parent=1 // pred_check
      _
    $region15: #{tpu_custom_call.1} parent=1 // pred_check_branch
      %26 = sbr.rel (0) target = $region17
    $region16: #{tpu_custom_call.1} parent=1 // pred_region
      _
    $region17: #{tpu_custom_call.1} parent=1 // pred_fallthru
      _
    // Predicated region
    $region18: #{tpu_custom_call.1} parent=1 // pred_check
      _
    $region19: #{tpu_custom_call.1} parent=1 // pred_check_branch
      %28 = sbr.rel (0) target = $region21
    $region20: #{tpu_custom_call.1} parent=1 // pred_region
      _
    $region21: #{tpu_custom_call.1} parent=1 // pred_fallthru
      _
    // Predicated region
    $region22: #{tpu_custom_call.1} parent=1 // pred_check
      _
    $region23: #{tpu_custom_call.1} parent=1 // pred_check_branch
      %30 = sbr.rel (0) target = $region25
    $region24: #{tpu_custom_call.1} parent=1 // pred_region
      _
    $region25: #{tpu_custom_call.1} parent=1 // pred_fallthru
      _
    // Predicated region
    $region26: #{tpu_custom_call.1} parent=1 // pred_check
      _
    $region27: #{tpu_custom_call.1} parent=1 // pred_check_branch
      %32 = sbr.rel (0) target = $region29
    $region28: #{tpu_custom_call.1} parent=1 // pred_region
      _
    $region29: #{tpu_custom_call.1} parent=1 // pred_fallthru
      _
    // Predicated region
    $region30: #{tpu_custom_call.1} parent=1 // pred_check
      _
    $region31: #{tpu_custom_call.1} parent=1 // pred_check_branch
      %34 = sbr.rel (0) target = $region33
    $region32: #{tpu_custom_call.1} parent=1 // pred_region
      _
    $region33: #{tpu_custom_call.1} parent=1 // pred_fallthru
      _
    // Predicated region
    $region34: #{tpu_custom_call.1} parent=1 // pred_check
      _
    $region35: #{tpu_custom_call.1} parent=1 // pred_check_branch
      %36 = sbr.rel (0) target = $region37
    $region36: #{tpu_custom_call.1} parent=1 // pred_region
      _
    $region37: #{tpu_custom_call.1} parent=1 // pred_fallthru
      _
    // Predicated region
    $region38: #{tpu_custom_call.1} parent=1 // pred_check
      _
    $region39: #{tpu_custom_call.1} parent=1 // pred_check_branch
      %38 = sbr.rel (0) target = $region41
    $region40: #{tpu_custom_call.1} parent=1 // pred_region
      _
    $region41: #{tpu_custom_call.1} parent=1 // pred_fallthru
      _
    // Predicated region
    $region42: #{tpu_custom_call.1} parent=1 // pred_check
      _
    $region43: #{tpu_custom_call.1} parent=1 // pred_check_branch
      %40 = sbr.rel (0) target = $region45
    $region44: #{tpu_custom_call.1} parent=1 // pred_region
      _
    $region45: #{tpu_custom_call.1} parent=1 // pred_fallthru
      _
    // Predicated region
    $region46: #{tpu_custom_call.1} parent=1 // pred_check
      _
    $region47: #{tpu_custom_call.1} parent=1 // pred_check_branch
      %42 = sbr.rel (0) target = $region49
    $region48: #{tpu_custom_call.1} parent=1 // pred_region
      _
    $region49: #{tpu_custom_call.1} parent=1 // pred_fallthru
      _
    // Predicated region
    $region50: #{tpu_custom_call.1} parent=1 // pred_check
      _
    $region51: #{tpu_custom_call.1} parent=1 // pred_check_branch
      %44 = sbr.rel (0) target = $region53
    $region52: #{tpu_custom_call.1} parent=1 // pred_region
      _
    $region53: #{tpu_custom_call.1} parent=1 // pred_fallthru
      _
    %v46 = vld [vmem:[%s0] sm:$0xff]
    %v47 = vld [vmem:[%s0 + $0x8] sm:$0xff]
    %v48 = vld [vmem:[%s1] sm:$0x1]
    %v49 = vld [vmem:[%s2] sm:$0x1]
    %vm50 = vcmask 261120
    %v51 = vsel %vm50, %v46, 0.0
    %52 = vadd.xlane.f32.xlu0 %v51
    %v53 = vpop.xlane.xlu0 %52
    %v54 = vsel %vm50, %v47, 0.0
    %55 = vadd.xlane.f32.xlu0 %v54
    %v56 = vpop.xlane.xlu0 %55
    %v57 = vrcp.pop 32.0
    %v58 = vmul.f32 32.0, %v57
    %v59 = vsub.f32 1.0, %v58
    %v60 = vmul.f32 %v57, %v59
    %v61 = vadd.f32 %v57, %v60
    %vm62 = vweird.f32 %v57
    %v63 = vsel %vm62, %v57, %v61
    %v64 = vmul.f32 %v53, %v63
    %v65 = vmul.f32 %v56, %v63
    %v66 = vsub.f32 %v46, %v64
    %v67 = vsub.f32 %v47, %v65
    %v68 = vmul.f32 %v66, %v66
    %v69 = vmul.f32 %v67, %v67
    %v70 = vsel %vm50, %v68, 0.0
    %71 = vadd.xlane.f32.xlu0 %v70
    %v72 = vpop.xlane.xlu0 %71
    %v73 = vsel %vm50, %v69, 0.0
    %74 = vadd.xlane.f32.xlu0 %v73
    %v75 = vpop.xlane.xlu0 %74
    %v76 = vmul.f32 %v72, %v63
    %v77 = vmul.f32 %v75, %v63
    %v78 = vadd.f32 %v76, 1e-05
    %v79 = vadd.f32 %v77, 1e-05
    %v80 = vrsqrt.pop %v78
    %v81 = vmul.f32 %v80, %v78
    %v82 = vmul.f32 %v81, %v80
    %v83 = vmul.f32 0.5, %v82
    %v84 = vsub.f32 1.5, %v83
    %v85 = vmul.f32 %v80, %v84
    %vm86 = vweird.f32 %v78
    %vm87 = vweird.f32 %v80
    %vm88 = vmor %vm86, %vm87
    %v89 = vsel %vm88, %v80, %v85
    %v90 = vrsqrt.pop %v79
    %v91 = vmul.f32 %v90, %v79
    %v92 = vmul.f32 %v91, %v90
    %v93 = vmul.f32 0.5, %v92
    %v94 = vsub.f32 1.5, %v93
    %v95 = vmul.f32 %v90, %v94
    %vm96 = vweird.f32 %v79
    %vm97 = vweird.f32 %v90
    %vm98 = vmor %vm96, %vm97
    %v99 = vsel %vm98, %v90, %v95
    %v100 = vmul.f32 %v66, %v89
    %v101 = vmul.f32 %v67, %v99
    %v103 = vperm.slane %v48, 0
    %v105 = vmul.f32 %v100, %v103
    %v106 = vmul.f32 %v101, %v103
    %v108 = vperm.slane %v49, 0
    %v110 = vadd.f32 %v105, %v108
    %v111 = vadd.f32 %v106, %v108
    %v112 = vpack.c.bf16 %v111, %v110
    %v113 = vld [vmem:[%s3] sm:$0xf]
    %v114 = vld [vmem:[%s3 + $0x4] sm:$0xf]
    %v115 = vld [vmem:[%s3 + $0x8] sm:$0xf]
    %v116 = vld [vmem:[%s3 + $0xc] sm:$0xf]
    %v117 = vld [vmem:[%s4] sm:$0x1]
    %v119 = vperm.slane %v117, 0
    %v125 = vunpack.c.l.b16 %v113
    %v126 = vunpack.c.l.b16 %v114
    %v127 = vunpack.c.l.b16 %v115
    %v128 = vunpack.c.l.b16 %v116
    %v129 = vpack.c.b16 %v126, %v125
    %v130 = vpack.c.b16 %v128, %v127
    %v134 = vsel %vm50, %v112, 0
    %136 = vmatpush.bf16.msra.mxu0 0
    %137 = vmatpush.bf16.msra.mxu0 0
    %138 = vmatpush.bf16.msra.mxu0 0
    %139 = vmatpush.bf16.msra.mxu0 0
    %140 = vmatpush.bf16.msra.mxu0 0
    %141 = vmatpush.bf16.msra.mxu0 0
    %142 = vmatpush.bf16.msra.mxu0 %v130
    %143 = vmatpush.bf16.msra.mxu0 %v129
    %144 = vmatmul.bf16.gmra.mxu0 %v134
    %v145 = vpop.f32.mrf.mxu0
    %v146 = vadd.f32 %v119, %v145
    %v147 = vpop.f32.mrf.mxu0
    %v148 = vadd.f32 %v119, %v147
    %149 = vdwg.mxu0
    %v150 = vmul.f32 %v146, 0.5
    %v151 = vmul.f32 %v148, 0.5
    %v152 = vmul.f32 %v146, 0.70710677
    %v153 = vmul.f32 %v148, 0.70710677
    %v154 = vmul.f32 %v152, %v152
    %v155 = vmin.f32 16.0, %v154
    %v156 = vmul.f32 %v155, 2.1237322e-06
    %v157 = vadd.f32 %v156, 0.00028619796
    %v158 = vmul.f32 %v155, %v157
    %v159 = vadd.f32 %v158, 0.0036580483
    %v160 = vmul.f32 %v155, %v159
    %v161 = vadd.f32 %v160, 0.05243302
    %v162 = vmul.f32 %v155, %v161
    %v163 = vadd.f32 %v162, 0.18741608
    %v164 = vmul.f32 %v155, %v163
    %v165 = vadd.f32 %v164, 1.1283791
    %v166 = vmul.f32 %v152, %v165
    %v167 = vmul.f32 %v155, 3.8918573e-05
    %v168 = vadd.f32 %v167, 0.001143296
    %v169 = vmul.f32 %v155, %v168
    %v170 = vadd.f32 %v169, 0.014752088
    %v171 = vmul.f32 %v155, %v170
    %v172 = vadd.f32 %v171, 0.112945676
    %v173 = vmul.f32 %v155, %v172
    %v174 = vadd.f32 %v173, 0.4994258
    %v175 = vmul.f32 %v155, %v174
    %v176 = vadd.f32 %v175, 1.0
    %v177 = vrcp.pop %v176
    %v178 = vmul.f32 %v176, %v177
    %v179 = vsub.f32 1.0, %v178
    %v180 = vmul.f32 %v177, %v179
    %v181 = vadd.f32 %v177, %v180
    %vm182 = vweird.f32 %v176
    %vm183 = vweird.f32 %v177
    %vm184 = vmor %vm182, %vm183
    %v185 = vsel %vm184, %v177, %v181
    %v186 = vand.u32 2147483647, %v176
    %vm187 = vcmp.eq.f32.partialorder %v186, 8.507059e+37
    %v188 = vand.u32 %v176, 2147483648
    %v189 = vor.u32 1.1754944e-38, %v188
    %v190 = vsel %vm187, %v189, %v185
    %v191 = vmul.f32 %v166, %v190
    %v192 = vmin.f32 %v191, 1.0
    %v193 = vmax.f32 %v192, -1.0
    %v194 = vmul.f32 %v153, %v153
    %v195 = vmin.f32 16.0, %v194
    %v196 = vmul.f32 %v195, 2.1237322e-06
    %v197 = vadd.f32 %v196, 0.00028619796
    %v198 = vmul.f32 %v195, %v197
    %v199 = vadd.f32 %v198, 0.0036580483
    %v200 = vmul.f32 %v195, %v199
    %v201 = vadd.f32 %v200, 0.05243302
    %v202 = vmul.f32 %v195, %v201
    %v203 = vadd.f32 %v202, 0.18741608
    %v204 = vmul.f32 %v195, %v203
    %v205 = vadd.f32 %v204, 1.1283791
    %v206 = vmul.f32 %v153, %v205
    %v207 = vmul.f32 %v195, 3.8918573e-05
    %v208 = vadd.f32 %v207, 0.001143296
    %v209 = vmul.f32 %v195, %v208
    %v210 = vadd.f32 %v209, 0.014752088
    %v211 = vmul.f32 %v195, %v210
    %v212 = vadd.f32 %v211, 0.112945676
    %v213 = vmul.f32 %v195, %v212
    %v214 = vadd.f32 %v213, 0.4994258
    %v215 = vmul.f32 %v195, %v214
    %v216 = vadd.f32 %v215, 1.0
    %v217 = vrcp.pop %v216
    %v218 = vmul.f32 %v216, %v217
    %v219 = vsub.f32 1.0, %v218
    %v220 = vmul.f32 %v217, %v219
    %v221 = vadd.f32 %v217, %v220
    %vm222 = vweird.f32 %v216
    %vm223 = vweird.f32 %v217
    %vm224 = vmor %vm222, %vm223
    %v225 = vsel %vm224, %v217, %v221
    %v226 = vand.u32 2147483647, %v216
    %vm227 = vcmp.eq.f32.partialorder %v226, 8.507059e+37
    %v228 = vand.u32 %v216, 2147483648
    %v229 = vor.u32 1.1754944e-38, %v228
    %v230 = vsel %vm227, %v229, %v225
    %v231 = vmul.f32 %v206, %v230
    %v232 = vmin.f32 %v231, 1.0
    %v233 = vmax.f32 %v232, -1.0
    %v234 = vadd.f32 %v193, 1.0
    %v235 = vadd.f32 %v233, 1.0
    %v236 = vmul.f32 %v150, %v234
    %v237 = vmul.f32 %v151, %v235
    %v238 = vpack.c.bf16 %v237, %v236
    %v239 = vld [vmem:[%s5] sm:$0xf]
    %v240 = vld [vmem:[%s5 + $0x4] sm:$0xf]
    %v241 = vld [vmem:[%s5 + $0x8] sm:$0xf]
    %v242 = vld [vmem:[%s5 + $0xc] sm:$0xf]
    %v243 = vld [vmem:[%s5 + $0x10] sm:$0xf]
    %v244 = vld [vmem:[%s5 + $0x14] sm:$0xf]
    %v245 = vld [vmem:[%s5 + $0x18] sm:$0xf]
    %v246 = vld [vmem:[%s5 + $0x1c] sm:$0xf]
    %v247 = vld [vmem:[%s6] sm:$0x1]
    %v249 = vperm.slane %v247, 0
    %v259 = vunpack.c.l.b16 %v239
    %v260 = vunpack.c.l.b16 %v240
    %v261 = vunpack.c.l.b16 %v241
    %v262 = vunpack.c.l.b16 %v242
    %v263 = vunpack.c.l.b16 %v243
    %v264 = vunpack.c.l.b16 %v244
    %v265 = vunpack.c.l.b16 %v245
    %v266 = vunpack.c.l.b16 %v246
    %v267 = vpack.c.b16 %v260, %v259
    %v268 = vpack.c.b16 %v262, %v261
    %v269 = vpack.c.b16 %v264, %v263
    %v270 = vpack.c.b16 %v266, %v265
    %vm275 = vcmask 523264
    %v277 = vsel %vm275, %v238, 0
    %279 = vmatpush.bf16.msra.mxu0 0
    %280 = vmatpush.bf16.msra.mxu0 0
    %281 = vmatpush.bf16.msra.mxu0 0
    %282 = vmatpush.bf16.msra.mxu0 0
    %283 = vmatpush.bf16.msra.mxu0 %v270
    %284 = vmatpush.bf16.msra.mxu0 %v269
    %285 = vmatpush.bf16.msra.mxu0 %v268
    %286 = vmatpush.bf16.msra.mxu0 %v267
    %287 = vmatmul.bf16.gmra.mxu0 %v277
    %v288 = vpop.f32.mrf.mxu0
    %v289 = vadd.f32 %v249, %v288
    %v290 = vpop.f32.mrf.mxu0
    %v291 = vadd.f32 %v249, %v290
    %292 = vdwg.mxu0
    %v293 = vmul.f32 %v289, 0.5
    %v294 = vmul.f32 %v291, 0.5
    %v295 = vmul.f32 %v289, 0.70710677
    %v296 = vmul.f32 %v291, 0.70710677
    %v297 = vmul.f32 %v295, %v295
    %v298 = vmin.f32 16.0, %v297
    %v299 = vmul.f32 %v298, 2.1237322e-06
    %v300 = vadd.f32 %v299, 0.00028619796
    %v301 = vmul.f32 %v298, %v300
    %v302 = vadd.f32 %v301, 0.0036580483
    %v303 = vmul.f32 %v298, %v302
    %v304 = vadd.f32 %v303, 0.05243302
    %v305 = vmul.f32 %v298, %v304
    %v306 = vadd.f32 %v305, 0.18741608
    %v307 = vmul.f32 %v298, %v306
    %v308 = vadd.f32 %v307, 1.1283791
    %v309 = vmul.f32 %v295, %v308
    %v310 = vmul.f32 %v298, 3.8918573e-05
    %v311 = vadd.f32 %v310, 0.001143296
    %v312 = vmul.f32 %v298, %v311
    %v313 = vadd.f32 %v312, 0.014752088
    %v314 = vmul.f32 %v298, %v313
    %v315 = vadd.f32 %v314, 0.112945676
    %v316 = vmul.f32 %v298, %v315
    %v317 = vadd.f32 %v316, 0.4994258
    %v318 = vmul.f32 %v298, %v317
    %v319 = vadd.f32 %v318, 1.0
    %v320 = vrcp.pop %v319
    %v321 = vmul.f32 %v319, %v320
    %v322 = vsub.f32 1.0, %v321
    %v323 = vmul.f32 %v320, %v322
    %v324 = vadd.f32 %v320, %v323
    %vm325 = vweird.f32 %v319
    %vm326 = vweird.f32 %v320
    %vm327 = vmor %vm325, %vm326
    %v328 = vsel %vm327, %v320, %v324
    %v329 = vand.u32 2147483647, %v319
    %vm330 = vcmp.eq.f32.partialorder %v329, 8.507059e+37
    %v331 = vand.u32 %v319, 2147483648
    %v332 = vor.u32 1.1754944e-38, %v331
    %v333 = vsel %vm330, %v332, %v328
    %v334 = vmul.f32 %v309, %v333
    %v335 = vmin.f32 %v334, 1.0
    %v336 = vmax.f32 %v335, -1.0
    %v337 = vmul.f32 %v296, %v296
    %v338 = vmin.f32 16.0, %v337
    %v339 = vmul.f32 %v338, 2.1237322e-06
    %v340 = vadd.f32 %v339, 0.00028619796
    %v341 = vmul.f32 %v338, %v340
    %v342 = vadd.f32 %v341, 0.0036580483
    %v343 = vmul.f32 %v338, %v342
    %v344 = vadd.f32 %v343, 0.05243302
    %v345 = vmul.f32 %v338, %v344
    %v346 = vadd.f32 %v345, 0.18741608
    %v347 = vmul.f32 %v338, %v346
    %v348 = vadd.f32 %v347, 1.1283791
    %v349 = vmul.f32 %v296, %v348
    %v350 = vmul.f32 %v338, 3.8918573e-05
    %v351 = vadd.f32 %v350, 0.001143296
    %v352 = vmul.f32 %v338, %v351
    %v353 = vadd.f32 %v352, 0.014752088
    %v354 = vmul.f32 %v338, %v353
    %v355 = vadd.f32 %v354, 0.112945676
    %v356 = vmul.f32 %v338, %v355
    %v357 = vadd.f32 %v356, 0.4994258
    %v358 = vmul.f32 %v338, %v357
    %v359 = vadd.f32 %v358, 1.0
    %v360 = vrcp.pop %v359
    %v361 = vmul.f32 %v359, %v360
    %v362 = vsub.f32 1.0, %v361
    %v363 = vmul.f32 %v360, %v362
    %v364 = vadd.f32 %v360, %v363
    %vm365 = vweird.f32 %v359
    %vm366 = vweird.f32 %v360
    %vm367 = vmor %vm365, %vm366
    %v368 = vsel %vm367, %v360, %v364
    %v369 = vand.u32 2147483647, %v359
    %vm370 = vcmp.eq.f32.partialorder %v369, 8.507059e+37
    %v371 = vand.u32 %v359, 2147483648
    %v372 = vor.u32 1.1754944e-38, %v371
    %v373 = vsel %vm370, %v372, %v368
    %v374 = vmul.f32 %v349, %v373
    %v375 = vmin.f32 %v374, 1.0
    %v376 = vmax.f32 %v375, -1.0
    %v377 = vadd.f32 %v336, 1.0
    %v378 = vadd.f32 %v376, 1.0
    %v379 = vmul.f32 %v293, %v377
    %v380 = vmul.f32 %v294, %v378
    %v381 = vpack.c.bf16 %v380, %v379
    %v382 = vld [vmem:[%s7] sm:$0xf]
    %v383 = vld [vmem:[%s7 + $0x4] sm:$0xf]
    %v384 = vld [vmem:[%s7 + $0x8] sm:$0xf]
    %v385 = vld [vmem:[%s7 + $0xc] sm:$0xf]
    %v386 = vld [vmem:[%s8] sm:$0x1]
    %v388 = vperm.slane %v386, 0
    %v394 = vunpack.c.l.b16 %v382
    %v395 = vunpack.c.l.b16 %v383
    %v396 = vunpack.c.l.b16 %v384
    %v397 = vunpack.c.l.b16 %v385
    %v398 = vpack.c.b16 %v395, %v394
    %v399 = vpack.c.b16 %v397, %v396
    %v403 = vsel %vm50, %v381, 0
    %405 = vmatpush.bf16.msra.mxu0 0
    %406 = vmatpush.bf16.msra.mxu0 0
    %407 = vmatpush.bf16.msra.mxu0 0
    %408 = vmatpush.bf16.msra.mxu0 0
    %409 = vmatpush.bf16.msra.mxu0 0
    %410 = vmatpush.bf16.msra.mxu0 0
    %411 = vmatpush.bf16.msra.mxu0 %v399
    %412 = vmatpush.bf16.msra.mxu0 %v398
    %413 = vmatmul.bf16.gmra.mxu0 %v403
    %v414 = vpop.f32.mrf.mxu0
    %v415 = vadd.f32 %v388, %v414
    %v416 = vpop.f32.mrf.mxu0
    %v417 = vadd.f32 %v388, %v416
    %418 = vdwg.mxu0
    %v419 = vpack.c.bf16 %v47, %v46
    %v420 = vld [vmem:[%s9] sm:$0xf]
    %v421 = vld [vmem:[%s9 + $0x4] sm:$0xf]
    %v422 = vld [vmem:[%s9 + $0x8] sm:$0xf]
    %v423 = vld [vmem:[%s9 + $0xc] sm:$0xf]
    %v424 = vld [vmem:[%s10] sm:$0x1]
    %v426 = vperm.slane %v424, 0
    %v432 = vunpack.c.l.b16 %v420
    %v433 = vunpack.c.l.b16 %v421
    %v434 = vunpack.c.l.b16 %v422
    %v435 = vunpack.c.l.b16 %v423
    %v436 = vpack.c.b16 %v433, %v432
    %v437 = vpack.c.b16 %v435, %v434
    %v441 = vsel %vm50, %v419, 0
    %443 = vmatpush.bf16.msra.mxu0 0
    %444 = vmatpush.bf16.msra.mxu0 0
    %445 = vmatpush.bf16.msra.mxu0 0
    %446 = vmatpush.bf16.msra.mxu0 0
    %447 = vmatpush.bf16.msra.mxu0 0
    %448 = vmatpush.bf16.msra.mxu0 0
    %449 = vmatpush.bf16.msra.mxu0 %v437
    %450 = vmatpush.bf16.msra.mxu0 %v436
    %451 = vmatmul.bf16.gmra.mxu0 %v441
    %v452 = vpop.f32.mrf.mxu0
    %v453 = vadd.f32 %v426, %v452
    %v454 = vpop.f32.mrf.mxu0
    %v455 = vadd.f32 %v426, %v454
    %456 = vdwg.mxu0
    %v457 = vadd.f32 %v415, %v453
    %v458 = vadd.f32 %v417, %v455
    %v459 = vld [vmem:[%s11] sm:$0x1]
    %v460 = vld [vmem:[%s12] sm:$0x1]
    %vm461 = vcmask 130048
    %v462 = vsel %vm461, %v457, 0.0
    %463 = vadd.xlane.f32.xlu0 %v462
    %v464 = vpop.xlane.xlu0 %463
    %v465 = vsel %vm461, %v458, 0.0
    %466 = vadd.xlane.f32.xlu0 %v465
    %v467 = vpop.xlane.xlu0 %466
    %v468 = vrcp.pop 16.0
    %v469 = vmul.f32 16.0, %v468
    %v470 = vsub.f32 1.0, %v469
    %v471 = vmul.f32 %v468, %v470
    %v472 = vadd.f32 %v468, %v471
    %vm473 = vweird.f32 %v468
    %v474 = vsel %vm473, %v468, %v472
    %v475 = vmul.f32 %v464, %v474
    %v476 = vmul.f32 %v467, %v474
    %v477 = vsub.f32 %v457, %v475
    %v478 = vsub.f32 %v458, %v476
    %v479 = vmul.f32 %v477, %v477
    %v480 = vmul.f32 %v478, %v478
    %v481 = vsel %vm461, %v479, 0.0
    %482 = vadd.xlane.f32.xlu0 %v481
    %v483 = vpop.xlane.xlu0 %482
    %v484 = vsel %vm461, %v480, 0.0
    %485 = vadd.xlane.f32.xlu0 %v484
    %v486 = vpop.xlane.xlu0 %485
    %v487 = vmul.f32 %v483, %v474
    %v488 = vmul.f32 %v486, %v474
    %v489 = vadd.f32 %v487, 1e-05
    %v490 = vadd.f32 %v488, 1e-05
    %v491 = vrsqrt.pop %v489
    %v492 = vmul.f32 %v491, %v489
    %v493 = vmul.f32 %v492, %v491
    %v494 = vmul.f32 0.5, %v493
    %v495 = vsub.f32 1.5, %v494
    %v496 = vmul.f32 %v491, %v495
    %vm497 = vweird.f32 %v489
    %vm498 = vweird.f32 %v491
    %vm499 = vmor %vm497, %vm498
    %v500 = vsel %vm499, %v491, %v496
    %v501 = vrsqrt.pop %v490
    %v502 = vmul.f32 %v501, %v490
    %v503 = vmul.f32 %v502, %v501
    %v504 = vmul.f32 0.5, %v503
    %v505 = vsub.f32 1.5, %v504
    %v506 = vmul.f32 %v501, %v505
    %vm507 = vweird.f32 %v490
    %vm508 = vweird.f32 %v501
    %vm509 = vmor %vm507, %vm508
    %v510 = vsel %vm509, %v501, %v506
    %v511 = vmul.f32 %v477, %v500
    %v512 = vmul.f32 %v478, %v510
    %v514 = vperm.slane %v459, 0
    %v516 = vmul.f32 %v511, %v514
    %v517 = vmul.f32 %v512, %v514
    %v519 = vperm.slane %v460, 0
    %v521 = vadd.f32 %v516, %v519
    %v522 = vadd.f32 %v517, %v519
    %523 = vst.msk [vmem:[#allocation2] sm:$0xff] %vm461, %v521
    %524 = vst.msk [vmem:[#allocation2 + $0x8] sm:$0xff] %vm461, %v522
    // Predicated region
    $region54: #{tpu_custom_call.1} parent=1 // pred_check
      _
    $region55: #{tpu_custom_call.1} parent=1 // pred_check_branch
      %526 = sbr.rel (0) target = $region57
    $region56: #{tpu_custom_call.1} parent=1 // pred_region
      %528 = vsyncadd [#allocation3], 0
      %s529 = sshll.u32 [#allocation2], 4
      %s530 = int_to_ptr.vmem [resolvable:$true] %s529
      %s531 = sshll.u32 %s13, 4
      %s532 = int_to_ptr.hbm [resolvable:$true] %s531
      %537 = dma.vmem_to_hbm [thread:$0]  %s530, 256, %s532, [#allocation3], 128, 128, 8
    $region57: #{tpu_custom_call.1} parent=1 // pred_fallthru
      _
    // Predicated region
    $region58: #{tpu_custom_call.1} parent=1 // pred_check
      _
    $region59: #{tpu_custom_call.1} parent=1 // pred_check_branch
      %539 = sbr.rel (0) target = $region61
    $region60: #{tpu_custom_call.1} parent=1 // pred_region
      %541 = dma.done [#allocation3], 256
    $region61: #{tpu_custom_call.1} parent=1 // pred_fallthru
      _
    %542 = vsyncpa [#allocation3], 1

</llo_original>
